<compile_context>
chip_gen: v7x
topology: tpu7x:2x2x1
jax: 0.10.0
libtpu: 0.0.40
codegen_flags: <defaults>
</compile_context>

<pallas_src>
import functools
import math

import jax
import jax.numpy as jnp
from jax import lax
from jax.experimental import pallas as pl
from jax.experimental.pallas import tpu as pltpu


_VMEM_LIMIT_BYTES = 48 * 1024 * 1024      # < 64 MiB (v7x physical), > default scoped limits
_HIGHEST = lax.Precision.HIGHEST          # keep f32 matmul accuracy (kernel + reference)
_GELU_C = math.sqrt(2.0 / math.pi)


def _pick_row_tile(rows, row_bytes, target_bytes=8 * 1024 * 1024, max_rows=1024):
    """Largest sublane-aligned row tile whose single buffer stays under
    `target_bytes`, so 2 x (in + out) double-buffers fit scoped VMEM on every
    TPU generation (v5e/v6e 128 MiB, v7x 64 MiB)."""
    cap = max(8, min(max_rows, target_bytes // max(1, row_bytes)))
    cap = max(8, (cap // 8) * 8)
    if rows <= cap:
        return rows            # full dim: always a legal block shape
    return cap


def _pick_col_tile(n_cols, col_bytes, target_bytes=8 * 1024 * 1024):
    """Lane-dense (multiple-of-128) tile over the weight/output minor dim, so
    the (K, tile_n) weight block fits a VMEM budget even for huge layers."""
    if n_cols * col_bytes <= target_bytes:
        return n_cols          # full dim: always a legal block shape
    cap = (target_bytes // max(1, col_bytes) // 128) * 128
    cap = max(128, cap)
    return min(n_cols, cap)


# ---------------------------------------------------------------------------
# Fused  [LayerNorm] -> x @ W + b -> [GELU] -> [+ residual]
# LayerNorm matches the custom PyTorch one: a*(x-mean)/(std+eps)+b with
# torch.std (unbiased, N-1).
# ---------------------------------------------------------------------------
def _linear_kernel(*refs, eps, features, activation, fuse_ln, has_residual):
    it = iter(refs)
    x_ref = next(it)
    gamma_ref = beta_ref = None
    if fuse_ln:
        gamma_ref = next(it)
        beta_ref = next(it)
    w_ref = next(it)
    b_ref = next(it)
    res_ref = next(it) if has_residual else None
    o_ref = next(it)

    x = x_ref[...].astype(jnp.float32)                          # (tile_m, K)
    if fuse_ln:
        mean = jnp.mean(x, axis=-1, keepdims=True)
        diff = x - mean
        var = jnp.sum(diff * diff, axis=-1, keepdims=True) * jnp.float32(1.0 / (features - 1))
        inv = pl.reciprocal(jnp.sqrt(var) + jnp.float32(eps), approx=False)   # EUP slot
        x = (gamma_ref[...].astype(jnp.float32) * diff * inv
             + beta_ref[...].astype(jnp.float32))

    y = jnp.dot(x, w_ref[...].astype(jnp.float32),
                preferred_element_type=jnp.float32, precision=_HIGHEST)
    y = y + b_ref[...].astype(jnp.float32)
    if activation == "gelu":
        y = 0.5 * y * (1.0 + jnp.tanh(jnp.float32(_GELU_C)
                                      * (y + jnp.float32(0.044715) * y * y * y)))
    if has_residual:
        y = y + res_ref[...].astype(jnp.float32)
    o_ref[...] = y.astype(o_ref.dtype)


def linear_pallas(x2, w, b, *, ln=None, activation=None, residual=None, eps=1e-6):
    """x2: (M, K), w: (K, N), b: (N,).
    ln: optional (gamma, beta) -> LayerNorm applied to x2 before the matmul.
    residual: optional (M, N) added to the output."""
    M, K = x2.shape
    K2, N = w.shape
    assert K == K2
    if ln is not None:
        assert K >= 2, "LayerNorm needs features >= 2 (unbiased std divides by N-1)"
    b2 = b.reshape(1, N)

    tile_n = _pick_col_tile(N, K * 4)
    tile_m = _pick_row_tile(M, max(K, tile_n) * 4)
    grid = (pl.cdiv(M, tile_m), pl.cdiv(N, tile_n))

    in_specs = [pl.BlockSpec((tile_m, K), lambda i, j: (i, 0))]
    args = [x2]
    if ln is not None:
        gamma, beta = ln
        in_specs += [pl.BlockSpec((1, K), lambda i, j: (0, 0)),
                     pl.BlockSpec((1, K), lambda i, j: (0, 0))]
        args += [gamma.reshape(1, K), beta.reshape(1, K)]
    in_specs += [pl.BlockSpec((K, tile_n), lambda i, j: (0, j)),
                 pl.BlockSpec((1, tile_n), lambda i, j: (0, j))]
    args += [w, b2]
    if residual is not None:
        in_specs.append(pl.BlockSpec((tile_m, tile_n), lambda i, j: (i, j)))
        args.append(residual)

    kernel = functools.partial(
        _linear_kernel, eps=eps, features=K, activation=activation,
        fuse_ln=ln is not None, has_residual=residual is not None)

    flops = (2 * M * K * N
             + (8 * M * K if ln is not None else 0)
             + (10 * M * N if activation == "gelu" else 0)
             + (M * N if residual is not None else 0))
    transcendentals = (M * N if activation == "gelu" else 0) + (2 * M if ln is not None else 0)
    bytes_accessed = 4 * (M * K + K * N + N + M * N
                          + (M * N if residual is not None else 0)
                          + (2 * K if ln is not None else 0))

    return pl.pallas_call(
        kernel,
        out_shape=jax.ShapeDtypeStruct((M, N), x2.dtype),
        grid_spec=pltpu.PrefetchScalarGridSpec(
            num_scalar_prefetch=0,
            grid=grid,
            in_specs=in_specs,
            out_specs=pl.BlockSpec((tile_m, tile_n), lambda i, j: (i, j)),
        ),
        compiler_params=pltpu.CompilerParams(
            dimension_semantics=("parallel", "parallel"),
            vmem_limit_bytes=_VMEM_LIMIT_BYTES,
        ),
        cost_estimate=pl.CostEstimate(
            flops=flops, transcendentals=transcendentals,
            bytes_accessed=bytes_accessed),
    )(*args)


# ---------------------------------------------------------------------------
# Scaled dot-product attention, one (batch, head) tile per grid step
# ---------------------------------------------------------------------------
def _attention_kernel(q_ref, k_ref, v_ref, mask_ref, o_ref, *, scale):
    q = q_ref[...].astype(jnp.float32)      # (S, Dk)
    k = k_ref[...].astype(jnp.float32)      # (S, Dk)
    v = v_ref[...].astype(jnp.float32)      # (S, Dk)
    m = mask_ref[...]                       # (S, S)
    scores = jnp.dot(q, k.T, preferred_element_type=jnp.float32,
                     precision=_HIGHEST) * jnp.float32(scale)
    scores = jnp.where(m == 0, jnp.float32(-1e9), scores)
    smax = jnp.max(scores, axis=-1, keepdims=True)
    p = jnp.exp(scores - smax)
    denom = jnp.sum(p, axis=-1, keepdims=True)
    p = p * pl.reciprocal(denom, approx=False)
    o = jnp.dot(p, v, preferred_element_type=jnp.float32, precision=_HIGHEST)
    o_ref[...] = o.astype(o_ref.dtype)


def attention_pallas(q, k, v, mask):
    """q,k,v: (B, H, S, Dk); mask: (B, 1, S, S) with 1 = attend, 0 = masked."""
    B, H, S, Dk = q.shape
    scale = 1.0 / math.sqrt(Dk)
    qkv_spec = pl.BlockSpec((None, None, S, Dk), lambda b, h: (b, h, 0, 0))
    mask_spec = pl.BlockSpec((None, None, S, S), lambda b, h: (b, 0, 0, 0))
    kernel = functools.partial(_attention_kernel, scale=scale)
    return pl.pallas_call(
        kernel,
        out_shape=jax.ShapeDtypeStruct((B, H, S, Dk), q.dtype),
        grid_spec=pltpu.PrefetchScalarGridSpec(
            num_scalar_prefetch=0,
            grid=(B, H),
            in_specs=[qkv_spec, qkv_spec, qkv_spec, mask_spec],
            out_specs=pl.BlockSpec((None, None, S, Dk), lambda b, h: (b, h, 0, 0)),
        ),
        compiler_params=pltpu.CompilerParams(
            dimension_semantics=("parallel", "parallel"),
            vmem_limit_bytes=_VMEM_LIMIT_BYTES,
        ),
        cost_estimate=pl.CostEstimate(
            flops=B * H * (4 * S * S * Dk + 6 * S * S),
            transcendentals=B * H * S * S,
            bytes_accessed=4 * (4 * B * H * S * Dk + B * S * S),
        ),
    )(q, k, v, mask)


# ---------------------------------------------------------------------------
# TransformerBlock forward (dropout == identity, i.e. eval mode)
# ---------------------------------------------------------------------------
def transformer_block_pallas(params, x, mask, eps=1e-6):
    B, S, H = x.shape
    nh = params["attn_heads"]
    dk = H // nh
    x2 = x.reshape(B * S, H)

    # ---- input sublayer: x + MHA(LN1(x))
    # fused LN1 + single wide QKV projection (lane-dense (M, 3H) output)
    wqkv = jnp.concatenate([params["wq"], params["wk"], params["wv"]], axis=1)
    bqkv = jnp.concatenate([params["bq"], params["bk"], params["bv"]], axis=0)
    qkv = linear_pallas(x2, wqkv, bqkv,
                        ln=(params["ln1_a"], params["ln1_b"]), eps=eps)
    q, k, v = qkv[:, :H], qkv[:, H:2 * H], qkv[:, 2 * H:]

    def split_heads(t):
        return t.reshape(B, S, nh, dk).transpose(0, 2, 1, 3)

    attn = attention_pallas(split_heads(q), split_heads(k), split_heads(v), mask)
    attn = attn.transpose(0, 2, 1, 3).reshape(B * S, H)
    # output projection with fused residual add
    x2 = linear_pallas(attn, params["wo"], params["bo"], residual=x2)

    # ---- output sublayer: x + FFN(LN2(x))
    # fused LN2 + FFN-up + GELU, then FFN-down with fused residual add
    h1 = linear_pallas(x2, params["w1"], params["b1"],
                       ln=(params["ln2_a"], params["ln2_b"]),
                       activation="gelu", eps=eps)
    x2 = linear_pallas(h1, params["w2"], params["b2"], residual=x2)

    # TODO(synk): nn.Dropout layers are treated as identity (inference mode);
    # stochastic dropout would use pltpu.prng_seed / pltpu.prng_random_bits.
    return x2.reshape(B, S, H)


# ---------------------------------------------------------------------------
# Pure-JAX reference matching the PyTorch module semantics (eval mode)
# ---------------------------------------------------------------------------
def transformer_block_ref(params, x, mask, eps=1e-6):
    def mm(a, b):
        return jnp.matmul(a, b, precision=_HIGHEST)

    def ln(t, a, b):
        mean = jnp.mean(t, -1, keepdims=True)
        var = jnp.sum((t - mean) ** 2, -1, keepdims=True) / (t.shape[-1] - 1)
        std = jnp.sqrt(var)
        return a * (t - mean) / (std + eps) + b

    def gelu(t):
        return 0.5 * t * (1.0 + jnp.tanh(math.sqrt(2.0 / math.pi)
                                         * (t + 0.044715 * t ** 3)))

    B, S, H = x.shape
    nh = params["attn_heads"]
    dk = H // nh

    xn = ln(x, params["ln1_a"], params["ln1_b"])
    q = mm(xn, params["wq"]) + params["bq"]
    k = mm(xn, params["wk"]) + params["bk"]
    v = mm(xn, params["wv"]) + params["bv"]

    def split(t):
        return t.reshape(B, S, nh, dk).transpose(0, 2, 1, 3)

    q, k, v = split(q), split(k), split(v)
    scores = mm(q, jnp.swapaxes(k, -1, -2)) / math.sqrt(dk)
    scores = jnp.where(mask == 0, -1e9, scores)
    p = jax.nn.softmax(scores, axis=-1)
    attn = mm(p, v).transpose(0, 2, 1, 3).reshape(B, S, H)
    x = x + mm(attn, params["wo"]) + params["bo"]

    xn = ln(x, params["ln2_a"], params["ln2_b"])
    ff = mm(gelu(mm(xn, params["w1"]) + params["b1"]), params["w2"]) + params["b2"]
    return x + ff


if __name__ == "__main__":
    batch, seq, hidden, heads, d_ff = 2, 8, 32, 4, 128

    key = jax.random.PRNGKey(0)
    keys = jax.random.split(key, 12)

    def w(kk, fan_in, fan_out):
        return jax.random.normal(kk, (fan_in, fan_out), dtype=jnp.float32) / math.sqrt(fan_in)

    params = {
        "attn_heads": heads,
        "ln1_a": jnp.ones((hidden,), jnp.float32),
        "ln1_b": jnp.zeros((hidden,), jnp.float32),
        "ln2_a": jnp.ones((hidden,), jnp.float32),
        "ln2_b": jnp.zeros((hidden,), jnp.float32),
        "wq": w(keys[0], hidden, hidden), "bq": 0.01 * jax.random.normal(keys[1], (hidden,), jnp.float32),
        "wk": w(keys[2], hidden, hidden), "bk": 0.01 * jax.random.normal(keys[3], (hidden,), jnp.float32),
        "wv": w(keys[4], hidden, hidden), "bv": 0.01 * jax.random.normal(keys[5], (hidden,), jnp.float32),
        "wo": w(keys[6], hidden, hidden), "bo": 0.01 * jax.random.normal(keys[7], (hidden,), jnp.float32),
        "w1": w(keys[8], hidden, d_ff),   "b1": 0.01 * jax.random.normal(keys[9], (d_ff,), jnp.float32),
        "w2": w(keys[10], d_ff, hidden),  "b2": 0.01 * jax.random.normal(keys[11], (hidden,), jnp.float32),
    }

    x = jax.random.normal(jax.random.PRNGKey(1), (batch, seq, hidden), dtype=jnp.float32)
    # causal mask (1 = attend, 0 = masked), shape (B, 1, S, S), broadcast over heads
    mask = jnp.broadcast_to(jnp.tril(jnp.ones((seq, seq), jnp.float32)),
                            (batch, 1, seq, seq))

    out = transformer_block_pallas(params, x, mask)
    out = jax.block_until_ready(out)

    ref = transformer_block_ref(params, x, mask)
    assert out.shape == x.shape
    err = float(jnp.max(jnp.abs(out - ref)))
    assert jnp.allclose(out, ref, atol=1e-4, rtol=1e-4), f"mismatch vs reference, max|err|={err}"

    print("KERNEL_OK")
</pallas_src>

<mosaic_0001>
module attributes {stable_mosaic.version = 11 : i64} {
  func.func @_linear_kernel(%arg0: i32, %arg1: i32, %arg2: memref<16x32xf32, #tpu.memory_space<vmem>>, %arg3: memref<1x32xf32, #tpu.memory_space<vmem>>, %arg4: memref<1x32xf32, #tpu.memory_space<vmem>>, %arg5: memref<32x96xf32, #tpu.memory_space<vmem>>, %arg6: memref<1x96xf32, #tpu.memory_space<vmem>>, %arg7: memref<16x96xf32, #tpu.memory_space<vmem>>) attributes {dimension_semantics = [#tpu.dimension_semantics<parallel>, #tpu.dimension_semantics<parallel>], iteration_bounds = array<i64: 1, 1>, scalar_prefetch = 0 : i64, scratch_operands = 0 : i64, tpu.core_type = #tpu.core_type<tc>, window_params = [{transform_indices = @transform_0, window_bounds = array<i64: 16, 32>}, {pipeline_mode = #tpu.pipeline_mode<synchronous>, transform_indices = @transform_1, window_bounds = array<i64: 1, 32>}, {pipeline_mode = #tpu.pipeline_mode<synchronous>, transform_indices = @transform_2, window_bounds = array<i64: 1, 32>}, {transform_indices = @transform_3, window_bounds = array<i64: 32, 96>}, {transform_indices = @transform_4, window_bounds = array<i64: 1, 96>}, {transform_indices = @transform_5, window_bounds = array<i64: 16, 96>}]} {
    %c0 = arith.constant 0 : index
    %c0_0 = arith.constant 0 : index
    %0 = vector.load %arg2[%c0, %c0_0] : memref<16x32xf32, #tpu.memory_space<vmem>>, vector<16x32xf32>
    %cst = arith.constant dense<0.000000e+00> : vector<16xf32>
    %1 = vector.multi_reduction <add>, %0, %cst [1] : vector<16x32xf32> to vector<16xf32>
    %2 = vector.shape_cast %1 : vector<16xf32> to vector<16x1xf32>
    %cst_1 = arith.constant 3.200000e+01 : f32
    %3 = vector.broadcast %cst_1 : f32 to vector<16x1xf32>
    %4 = arith.divf %2, %3 : vector<16x1xf32>
    %5 = vector.broadcast %4 : vector<16x1xf32> to vector<16x32xf32>
    %6 = arith.subf %0, %5 : vector<16x32xf32>
    %7 = arith.mulf %6, %6 : vector<16x32xf32>
    %cst_2 = arith.constant dense<0.000000e+00> : vector<16xf32>
    %8 = vector.multi_reduction <add>, %7, %cst_2 [1] : vector<16x32xf32> to vector<16xf32>
    %9 = vector.shape_cast %8 : vector<16xf32> to vector<16x1xf32>
    %cst_3 = arith.constant 0.0322580636 : f32
    %10 = vector.broadcast %cst_3 : f32 to vector<16x1xf32>
    %11 = arith.mulf %9, %10 : vector<16x1xf32>
    %12 = math.sqrt %11 : vector<16x1xf32>
    %cst_4 = arith.constant 9.99999997E-7 : f32
    %13 = vector.broadcast %cst_4 : f32 to vector<16x1xf32>
    %14 = arith.addf %12, %13 : vector<16x1xf32>
    %15 = tpu.reciprocal %14 : vector<16x1xf32> -> vector<16x1xf32>
    %c0_5 = arith.constant 0 : index
    %c0_6 = arith.constant 0 : index
    %16 = vector.load %arg3[%c0_5, %c0_6] : memref<1x32xf32, #tpu.memory_space<vmem>>, vector<1x32xf32>
    %17 = vector.broadcast %16 : vector<1x32xf32> to vector<16x32xf32>
    %18 = arith.mulf %17, %6 : vector<16x32xf32>
    %19 = vector.broadcast %15 : vector<16x1xf32> to vector<16x32xf32>
    %20 = arith.mulf %18, %19 : vector<16x32xf32>
    %c0_7 = arith.constant 0 : index
    %c0_8 = arith.constant 0 : index
    %21 = vector.load %arg4[%c0_7, %c0_8] : memref<1x32xf32, #tpu.memory_space<vmem>>, vector<1x32xf32>
    %22 = vector.broadcast %21 : vector<1x32xf32> to vector<16x32xf32>
    %23 = arith.addf %20, %22 : vector<16x32xf32>
    %c0_9 = arith.constant 0 : index
    %c0_10 = arith.constant 0 : index
    %24 = vector.load %arg5[%c0_9, %c0_10] : memref<32x96xf32, #tpu.memory_space<vmem>>, vector<32x96xf32>
    %cst_11 = arith.constant dense<0.000000e+00> : vector<16x96xf32>
    %25 = tpu.matmul %23, %24, %cst_11 {dimension_numbers = #tpu.dot_dimension_numbers<[1], [0], [0], [1], [0, 0, 1, 1], [], []>, precision = #tpu.contract_precision<fp32>} : vector<16x32xf32>, vector<32x96xf32>, vector<16x96xf32> -> vector<16x96xf32>
    %c0_12 = arith.constant 0 : index
    %c0_13 = arith.constant 0 : index
    %26 = vector.load %arg6[%c0_12, %c0_13] : memref<1x96xf32, #tpu.memory_space<vmem>>, vector<1x96xf32>
    %27 = vector.broadcast %26 : vector<1x96xf32> to vector<16x96xf32>
    %28 = arith.addf %25, %27 : vector<16x96xf32>
    %c0_14 = arith.constant 0 : index
    %c0_15 = arith.constant 0 : index
    %29 = vector.load %arg7[%c0_14, %c0_15] : memref<16x96xf32, #tpu.memory_space<vmem>>, vector<16x96xf32>
    tpu.vector_store %arg7[%c0_14, %c0_15], %28 {strides = array<i32>} : memref<16x96xf32, #tpu.memory_space<vmem>>, vector<16x96xf32>,
    return
  }
  func.func @transform_0(%arg0: i32, %arg1: i32) -> (i32, i32) {
    %c0_i32 = arith.constant 0 : i32
    %c0_i32_0 = arith.constant 0 : i32
    return %arg0, %c0_i32 : i32, i32
  }
  func.func @transform_1(%arg0: i32, %arg1: i32) -> (i32, i32) {
    %c0_i32 = arith.constant 0 : i32
    %c0_i32_0 = arith.constant 0 : i32
    %c0_i32_1 = arith.constant 0 : i32
    return %c0_i32, %c0_i32_0 : i32, i32
  }
  func.func @transform_2(%arg0: i32, %arg1: i32) -> (i32, i32) {
    %c0_i32 = arith.constant 0 : i32
    %c0_i32_0 = arith.constant 0 : i32
    %c0_i32_1 = arith.constant 0 : i32
    return %c0_i32, %c0_i32_0 : i32, i32
  }
  func.func @transform_3(%arg0: i32, %arg1: i32) -> (i32, i32) {
    %c0_i32 = arith.constant 0 : i32
    %c0_i32_0 = arith.constant 0 : i32
    return %c0_i32, %arg1 : i32, i32
  }
  func.func @transform_4(%arg0: i32, %arg1: i32) -> (i32, i32) {
    %c0_i32 = arith.constant 0 : i32
    %c0_i32_0 = arith.constant 0 : i32
    return %c0_i32, %arg1 : i32, i32
  }
  func.func @transform_5(%arg0: i32, %arg1: i32) -> (i32, i32) {
    %c0_i32 = arith.constant 0 : i32
    return %arg0, %arg1 : i32, i32
  }
}

</mosaic_0001>

<llo_original>
// kernel: tpu_custom_call.1
$region0: #{tpu_custom_call.1}
  #allocation0 [shape = 'u32[]', space=smem, size = 0x4, offset = 0x4, fixed_abs, tag = 'smem constant byte address 0x4 - core index']
  #allocation1 [shape = 'u32[144,128]{1,0:T(1,128)}', space=vmem, size = 0x12000, scoped, tag = 'internal scratch']
  %s0 = inlined_call_operand.hbm [shape: f32[16,32], index: 0, kind: input, shape index: {}]
  %s1 = inlined_call_operand.vmem [shape: f32[1,32], index: 1, kind: input, shape index: {}]
  %s2 = inlined_call_operand.vmem [shape: f32[1,32], index: 2, kind: input, shape index: {}]
  %s3 = inlined_call_operand.hbm [shape: f32[32,96], index: 3, kind: input, shape index: {}]
  %s4 = inlined_call_operand.vmem [shape: f32[1,96], index: 4, kind: input, shape index: {}]
  %s5 = inlined_call_operand.hbm [shape: f32[16,96], index: 5, kind: output, shape index: {}]
  %s6 = sld [smem:[#allocation0]]
  $region38: #{tpu_custom_call.1} parent=0
    _
  %s8 = ssub.s32 1, %s6
  %s9 = scalar_select 0, %s8, %s6
  $region1: #{tpu_custom_call.1} parent=0
    #allocation2 [shape = 'u8[8192]{0}', space=vmem, size = 0x2000, scoped, tag = 'input window, operand 0, single buffered']
    #allocation3 [shape = 's32[1]{0}', space=sflag, size = 0x4, scoped, tag = 'scoped memory for tpu_custom_call.1']
    #allocation4 [shape = 's32[1]{0}', space=sflag, size = 0x4, scoped, tag = 'scoped memory for tpu_custom_call.1']
    #allocation5 [shape = 'u8[16384]{0}', space=vmem, size = 0x4000, scoped, tag = 'input window, operand 3, single buffered']
    #allocation6 [shape = 's32[1]{0}', space=sflag, size = 0x4, scoped, tag = 'scoped memory for tpu_custom_call.1']
    #allocation7 [shape = 'u8[8192]{0}', space=vmem, size = 0x2000, scoped, tag = 'output window, operand 0, single buffered']
    %10 = vsyncpa [#allocation3], 0
    %11 = vsyncpa [#allocation6], 0
    %12 = vsyncpa [#allocation4], 0
    // Predicated region
    $region2: #{tpu_custom_call.1} parent=1 // pred_check
      _
    $region3: #{tpu_custom_call.1} parent=1 // pred_check_branch
      %14 = sbr.rel (0) target = $region5
    $region4: #{tpu_custom_call.1} parent=1 // pred_region
      %s16 = ssub.s32 256, 256
      %17 = vsyncadd [#allocation3], %s16
      %s18 = sshll.u32 [#allocation2], 4
      %s19 = int_to_ptr.vmem [resolvable:$true] %s18
      %24 = dma.hbm_to_vmem [thread:$0]  %s0, 256, %s19, [#allocation3], 128, 128, 8
    $region5: #{tpu_custom_call.1} parent=1 // pred_fallthru
      _
    // Predicated region
    $region6: #{tpu_custom_call.1} parent=1 // pred_check
      _
    $region7: #{tpu_custom_call.1} parent=1 // pred_check_branch
      %26 = sbr.rel (0) target = $region9
    $region8: #{tpu_custom_call.1} parent=1 // pred_region
      _
    $region9: #{tpu_custom_call.1} parent=1 // pred_fallthru
      _
    // Predicated region
    $region10: #{tpu_custom_call.1} parent=1 // pred_check
      _
    $region11: #{tpu_custom_call.1} parent=1 // pred_check_branch
      %28 = sbr.rel (0) target = $region13
    $region12: #{tpu_custom_call.1} parent=1 // pred_region
      _
    $region13: #{tpu_custom_call.1} parent=1 // pred_fallthru
      _
    // Predicated region
    $region14: #{tpu_custom_call.1} parent=1 // pred_check
      _
    $region15: #{tpu_custom_call.1} parent=1 // pred_check_branch
      %30 = sbr.rel (0) target = $region17
    $region16: #{tpu_custom_call.1} parent=1 // pred_region
      %s32 = ssub.s32 512, 512
      %33 = vsyncadd [#allocation6], %s32
      %s34 = sshll.u32 [#allocation5], 4
      %s35 = int_to_ptr.vmem [resolvable:$true] %s34
      %40 = dma.hbm_to_vmem [thread:$0]  %s3, 512, %s35, [#allocation6], 128, 128, 8
    $region17: #{tpu_custom_call.1} parent=1 // pred_fallthru
      _
    // Predicated region
    $region18: #{tpu_custom_call.1} parent=1 // pred_check
      _
    $region19: #{tpu_custom_call.1} parent=1 // pred_check_branch
      %42 = sbr.rel (0) target = $region21
    $region20: #{tpu_custom_call.1} parent=1 // pred_region
      _
    $region21: #{tpu_custom_call.1} parent=1 // pred_fallthru
      _
    // Predicated region
    $region22: #{tpu_custom_call.1} parent=1 // pred_check
      _
    $region23: #{tpu_custom_call.1} parent=1 // pred_check_branch
      %44 = sbr.rel (0) target = $region25
    $region24: #{tpu_custom_call.1} parent=1 // pred_region
      %45 = dma.done [#allocation3], 256
    $region25: #{tpu_custom_call.1} parent=1 // pred_fallthru
      _
    // Predicated region
    $region26: #{tpu_custom_call.1} parent=1 // pred_check
      _
    $region27: #{tpu_custom_call.1} parent=1 // pred_check_branch
      %47 = sbr.rel (0) target = $region29
    $region28: #{tpu_custom_call.1} parent=1 // pred_region
      %48 = dma.done [#allocation6], 512
    $region29: #{tpu_custom_call.1} parent=1 // pred_fallthru
      _
    %v49 = vld [vmem:[#allocation2] sm:$0xff]
    %v50 = vld [vmem:[#allocation2 + $0x8] sm:$0xff]
    %vm51 = vcmask 261120
    %v52 = vsel %vm51, %v49, 0.0
    %53 = vadd.xlane.f32.xlu0 %v52
    %v54 = vpop.xlane.xlu0 %53
    %v55 = vsel %vm51, %v50, 0.0
    %56 = vadd.xlane.f32.xlu0 %v55
    %v57 = vpop.xlane.xlu0 %56
    %v58 = vrcp.pop 32.0
    %v59 = vmul.f32 %v54, %v58
    %v60 = vmul.f32 %v57, %v58
    %v61 = vsub.f32 %v49, %v59
    %v62 = vsub.f32 %v50, %v60
    %v63 = vmul.f32 %v61, %v61
    %v64 = vmul.f32 %v62, %v62
    %v65 = vsel %vm51, %v63, 0.0
    %66 = vadd.xlane.f32.xlu0 %v65
    %v67 = vpop.xlane.xlu0 %66
    %v68 = vsel %vm51, %v64, 0.0
    %69 = vadd.xlane.f32.xlu0 %v68
    %v70 = vpop.xlane.xlu0 %69
    %v71 = vmul.f32 %v67, 0.032258064
    %v72 = vmul.f32 %v70, 0.032258064
    %v73 = vrsqrt.pop %v71
    %v74 = vmul.f32 %v71, %v73
    %vm75 = vcmp.eq.f32.partialorder %v71, inf
    %v76 = vsel %vm75, %v71, %v74
    %vm77 = vcmp.eq.f32.partialorder %v71, 0.0
    %v78 = vand.u32 %v71, 2147483648
    %v79 = vsel %vm77, %v78, %v76
    %v80 = vrsqrt.pop %v72
    %v81 = vmul.f32 %v72, %v80
    %vm82 = vcmp.eq.f32.partialorder %v72, inf
    %v83 = vsel %vm82, %v72, %v81
    %vm84 = vcmp.eq.f32.partialorder %v72, 0.0
    %v85 = vand.u32 %v72, 2147483648
    %v86 = vsel %vm84, %v85, %v83
    %v87 = vadd.f32 %v79, 1e-06
    %v88 = vadd.f32 %v86, 1e-06
    %v89 = vrcp.pop %v87
    %v90 = vrcp.pop %v88
    %v91 = vld [vmem:[%s1] sm:$0x1]
    %v93 = vlaneseq
    %v94 = vshrl.u32 %v93, 7
    %v95 = vsub.s32 0, %v94
    %v96 = vrot.slane %v91, %v95
    %v98 = vmul.f32 %v96, %v61
    %v99 = vmul.f32 %v96, %v62
    %v100 = vmul.f32 %v98, %v89
    %v101 = vmul.f32 %v99, %v90
    %v102 = vld [vmem:[%s2] sm:$0x1]
    %v104 = vlaneseq
    %v105 = vshrl.u32 %v104, 7
    %v106 = vsub.s32 0, %v105
    %v107 = vrot.slane %v102, %v106
    %v109 = vadd.f32 %v100, %v107
    %v110 = vadd.f32 %v101, %v107
    %v111 = vld [vmem:[#allocation5] sm:$0xff]
    %v112 = vld [vmem:[#allocation5 + $0x8] sm:$0xff]
    %v113 = vld [vmem:[#allocation5 + $0x10] sm:$0xff]
    %v114 = vld [vmem:[#allocation5 + $0x18] sm:$0xff]
    %v115 = vld [vmem:[%s4] sm:$0x1]
    %v117 = vlaneseq
    %v118 = vshrl.u32 %v117, 7
    %v119 = vsub.s32 0, %v118
    %v120 = vrot.slane %v115, %v119
    %v123 = vsel %vm51, %v109, 0
    %v126 = vsel %vm51, %v110, 0
    %128 = vmatprep.subr.mxu0 0.0
    %v129 = vand.u32 %v111, 4294901760
    %130 = vmatpush1.msra.mxu0 %v129
    %131 = vmatprep.subr.mxu0 0.0
    %v132 = vand.u32 %v112, 4294901760
    %133 = vmatpush1.msra.mxu0 %v132
    %134 = vmatprep.subr.mxu0 0.0
    %v135 = vand.u32 %v113, 4294901760
    %136 = vmatpush1.msra.mxu0 %v135
    %137 = vmatprep.subr.mxu0 0.0
    %v138 = vand.u32 %v114, 4294901760
    %139 = vmatpush1.msra.mxu0 %v138
    %140 = vmatprep.subr.mxu0 0.0
    %141 = vmatpush1.msra.mxu0 0.0
    %142 = vmatprep.subr.mxu0 0.0
    %143 = vmatpush1.msra.mxu0 0.0
    %144 = vmatprep.subr.mxu0 0.0
    %145 = vmatpush1.msra.mxu0 0.0
    %146 = vmatprep.subr.mxu0 0.0
    %147 = vmatpush1.msra.mxu0 0.0
    %148 = vmatprep.subr.mxu0 0.0
    %149 = vmatpush1.msra.mxu0 0.0
    %150 = vmatprep.subr.mxu0 0.0
    %151 = vmatpush1.msra.mxu0 0.0
    %152 = vmatprep.subr.mxu0 0.0
    %153 = vmatpush1.msra.mxu0 0.0
    %154 = vmatprep.subr.mxu0 0.0
    %155 = vmatpush1.msra.mxu0 0.0
    %156 = vmatprep.subr.mxu0 0.0
    %157 = vmatpush1.msra.mxu0 0.0
    %158 = vmatprep.subr.mxu0 0.0
    %159 = vmatpush1.msra.mxu0 0.0
    %160 = vmatprep.subr.mxu0 0.0
    %161 = vmatpush1.msra.mxu0 0.0
    %162 = vmatprep.subr.mxu0 0.0
    %163 = vmatpush1.msra.mxu0 0.0
    %164 = vmatprep.subr.mxu0 0.0
    %165 = vmatpush1.msra.mxu0 0.0
    %166 = vmatprep.subr.mxu0 0.0
    %167 = vmatpush1.msra.mxu0 0.0
    %168 = vmatprep.subr.mxu0 0.0
    %169 = vmatpush1.msra.mxu0 0.0
    %170 = vmatprep.subr.mxu0 0.0
    %171 = vmatpush1.msra.mxu0 0.0
    %172 = vmatprep.subr.mxu0 0.0
    %173 = vmatpush1.msra.mxu0 0.0
    %174 = vmatprep.subr.mxu0 0.0
    %175 = vmatpush1.msra.mxu0 0.0
    %176 = vmatprep.subr.mxu0 0.0
    %177 = vmatpush1.msra.mxu0 0.0
    %178 = vmatprep.subr.mxu0 0.0
    %179 = vmatpush1.msra.mxu0 0.0
    %180 = vmatprep.subr.mxu0 0.0
    %181 = vmatpush1.msra.mxu0 0.0
    %182 = vmatprep.subr.mxu0 0.0
    %183 = vmatpush1.msra.mxu0 0.0
    %184 = vmatprep.subr.mxu0 0.0
    %185 = vmatpush1.msra.mxu0 0.0
    %186 = vmatprep.subr.mxu0 0.0
    %187 = vmatpush1.msra.mxu0 0.0
    %188 = vmatprep.subr.mxu0 0.0
    %189 = vmatpush1.msra.mxu0 0.0
    %190 = vmatprep.subr.mxu0 0.0
    %191 = vmatpush1.msra.mxu0 0.0
    %192 = vmatprep.subr.mxu0 0.0
    %193 = vmatpush1.msra.mxu0 0.0
    %194 = vmatprep.subr.mxu0 0.0
    %195 = vmatpush1.msra.mxu0 0.0
    %196 = vmatprep.mubr.f32.mxu0 0.0
    %v197 = vand.u32 %v123, 4294901760
    %v198 = vsub.f32 %v123, %v197
    %v199 = vand.u32 %v198, 4294901760
    %v200 = vsub.f32 %v198, %v199
    %v201 = vand.u32 %v200, 4294901760
    %202 = vmatmul.mubr.f32.gmra.mrb[0].mxu0 %v201
    %v203 = vpop.f32.mrb[0].mxu0
    %v204 = vadd.f32 %v120, %v203
    %v205 = vpop.f32.mrb[0].mxu0
    %206 = vmatprep.mubr.f32.mxu0 0.0
    %v207 = vand.u32 %v126, 4294901760
    %v208 = vsub.f32 %v126, %v207
    %v209 = vand.u32 %v208, 4294901760
    %v210 = vsub.f32 %v208, %v209
    %v211 = vand.u32 %v210, 4294901760
    %212 = vmatmul.mubr.f32.gmra.mrb[0].mxu0 %v211
    %v213 = vpop.f32.mrb[0].mxu0
    %v214 = vadd.f32 %v120, %v213
    %v215 = vpop.f32.mrb[0].mxu0
    %216 = vdwg.mxu0
    %217 = vmatprep.subr.mxu0 0.0
    %v218 = vand.u32 %v111, 4294901760
    %v219 = vsub.f32 %v111, %v218
    %v220 = vand.u32 %v219, 4294901760
    %v221 = vsub.f32 %v219, %v220
    %v222 = vand.u32 %v221, 4294901760
    %223 = vmatpush1.msra.mxu0 %v222
    %224 = vmatprep.subr.mxu0 0.0
    %v225 = vand.u32 %v112, 4294901760
    %v226 = vsub.f32 %v112, %v225
    %v227 = vand.u32 %v226, 4294901760
    %v228 = vsub.f32 %v226, %v227
    %v229 = vand.u32 %v228, 4294901760
    %230 = vmatpush1.msra.mxu0 %v229
    %231 = vmatprep.subr.mxu0 0.0
    %v232 = vand.u32 %v113, 4294901760
    %v233 = vsub.f32 %v113, %v232
    %v234 = vand.u32 %v233, 4294901760
    %v235 = vsub.f32 %v233, %v234
    %v236 = vand.u32 %v235, 4294901760
    %237 = vmatpush1.msra.mxu0 %v236
    %238 = vmatprep.subr.mxu0 0.0
    %v239 = vand.u32 %v114, 4294901760
    %v240 = vsub.f32 %v114, %v239
    %v241 = vand.u32 %v240, 4294901760
    %v242 = vsub.f32 %v240, %v241
    %v243 = vand.u32 %v242, 4294901760
    %244 = vmatpush1.msra.mxu0 %v243
    %245 = vmatprep.subr.mxu0 0.0
    %246 = vmatpush1.msra.mxu0 0.0
    %247 = vmatprep.subr.mxu0 0.0
    %248 = vmatpush1.msra.mxu0 0.0
    %249 = vmatprep.subr.mxu0 0.0
    %250 = vmatpush1.msra.mxu0 0.0
    %251 = vmatprep.subr.mxu0 0.0
    %252 = vmatpush1.msra.mxu0 0.0
    %253 = vmatprep.subr.mxu0 0.0
    %254 = vmatpush1.msra.mxu0 0.0
    %255 = vmatprep.subr.mxu0 0.0
    %256 = vmatpush1.msra.mxu0 0.0
    %257 = vmatprep.subr.mxu0 0.0
    %258 = vmatpush1.msra.mxu0 0.0
    %259 = vmatprep.subr.mxu0 0.0
    %260 = vmatpush1.msra.mxu0 0.0
    %261 = vmatprep.subr.mxu0 0.0
    %262 = vmatpush1.msra.mxu0 0.0
    %263 = vmatprep.subr.mxu0 0.0
    %264 = vmatpush1.msra.mxu0 0.0
    %265 = vmatprep.subr.mxu0 0.0
    %266 = vmatpush1.msra.mxu0 0.0
    %267 = vmatprep.subr.mxu0 0.0
    %268 = vmatpush1.msra.mxu0 0.0
    %269 = vmatprep.subr.mxu0 0.0
    %270 = vmatpush1.msra.mxu0 0.0
    %271 = vmatprep.subr.mxu0 0.0
    %272 = vmatpush1.msra.mxu0 0.0
    %273 = vmatprep.subr.mxu0 0.0
    %274 = vmatpush1.msra.mxu0 0.0
    %275 = vmatprep.subr.mxu0 0.0
    %276 = vmatpush1.msra.mxu0 0.0
    %277 = vmatprep.subr.mxu0 0.0
    %278 = vmatpush1.msra.mxu0 0.0
    %279 = vmatprep.subr.mxu0 0.0
    %280 = vmatpush1.msra.mxu0 0.0
    %281 = vmatprep.subr.mxu0 0.0
    %282 = vmatpush1.msra.mxu0 0.0
    %283 = vmatprep.subr.mxu0 0.0
    %284 = vmatpush1.msra.mxu0 0.0
    %285 = vmatprep.subr.mxu0 0.0
    %286 = vmatpush1.msra.mxu0 0.0
    %287 = vmatprep.subr.mxu0 0.0
    %288 = vmatpush1.msra.mxu0 0.0
    %289 = vmatprep.subr.mxu0 0.0
    %290 = vmatpush1.msra.mxu0 0.0
    %291 = vmatprep.subr.mxu0 0.0
    %292 = vmatpush1.msra.mxu0 0.0
    %293 = vmatprep.subr.mxu0 0.0
    %294 = vmatpush1.msra.mxu0 0.0
    %295 = vmatprep.subr.mxu0 0.0
    %296 = vmatpush1.msra.mxu0 0.0
    %297 = vmatprep.subr.mxu0 0.0
    %298 = vmatpush1.msra.mxu0 0.0
    %299 = vmatprep.subr.mxu0 0.0
    %300 = vmatpush1.msra.mxu0 0.0
    %301 = vmatprep.mubr.f32.mxu0 0.0
    %v302 = vand.u32 %v123, 4294901760
    %303 = vmatmul.mubr.f32.gmra.mrb[0].mxu0 %v302
    %v304 = vpop.f32.mrb[0].mxu0
    %v305 = vadd.f32 %v204, %v304
    %v306 = vpop.f32.mrb[0].mxu0
    %307 = vmatprep.mubr.f32.mxu0 0.0
    %v308 = vand.u32 %v126, 4294901760
    %309 = vmatmul.mubr.f32.gmra.mrb[0].mxu0 %v308
    %v310 = vpop.f32.mrb[0].mxu0
    %v311 = vadd.f32 %v214, %v310
    %v312 = vpop.f32.mrb[0].mxu0
    %313 = vdwg.mxu0
    %314 = vmatprep.subr.mxu0 0.0
    %v315 = vand.u32 %v111, 4294901760
    %v316 = vsub.f32 %v111, %v315
    %317 = vmatpush1.msra.mxu0 %v316
    %318 = vmatprep.subr.mxu0 0.0
    %v319 = vand.u32 %v112, 4294901760
    %v320 = vsub.f32 %v112, %v319
    %321 = vmatpush1.msra.mxu0 %v320
    %322 = vmatprep.subr.mxu0 0.0
    %v323 = vand.u32 %v113, 4294901760
    %v324 = vsub.f32 %v113, %v323
    %325 = vmatpush1.msra.mxu0 %v324
    %326 = vmatprep.subr.mxu0 0.0
    %v327 = vand.u32 %v114, 4294901760
    %v328 = vsub.f32 %v114, %v327
    %329 = vmatpush1.msra.mxu0 %v328
    %330 = vmatprep.subr.mxu0 0.0
    %331 = vmatpush1.msra.mxu0 0.0
    %332 = vmatprep.subr.mxu0 0.0
    %333 = vmatpush1.msra.mxu0 0.0
    %334 = vmatprep.subr.mxu0 0.0
    %335 = vmatpush1.msra.mxu0 0.0
    %336 = vmatprep.subr.mxu0 0.0
    %337 = vmatpush1.msra.mxu0 0.0
    %338 = vmatprep.subr.mxu0 0.0
    %339 = vmatpush1.msra.mxu0 0.0
    %340 = vmatprep.subr.mxu0 0.0
    %341 = vmatpush1.msra.mxu0 0.0
    %342 = vmatprep.subr.mxu0 0.0
    %343 = vmatpush1.msra.mxu0 0.0
    %344 = vmatprep.subr.mxu0 0.0
    %345 = vmatpush1.msra.mxu0 0.0
    %346 = vmatprep.subr.mxu0 0.0
    %347 = vmatpush1.msra.mxu0 0.0
    %348 = vmatprep.subr.mxu0 0.0
    %349 = vmatpush1.msra.mxu0 0.0
    %350 = vmatprep.subr.mxu0 0.0
    %351 = vmatpush1.msra.mxu0 0.0
    %352 = vmatprep.subr.mxu0 0.0
    %353 = vmatpush1.msra.mxu0 0.0
    %354 = vmatprep.subr.mxu0 0.0
    %355 = vmatpush1.msra.mxu0 0.0
    %356 = vmatprep.subr.mxu0 0.0
    %357 = vmatpush1.msra.mxu0 0.0
    %358 = vmatprep.subr.mxu0 0.0
    %359 = vmatpush1.msra.mxu0 0.0
    %360 = vmatprep.subr.mxu0 0.0
    %361 = vmatpush1.msra.mxu0 0.0
    %362 = vmatprep.subr.mxu0 0.0
    %363 = vmatpush1.msra.mxu0 0.0
    %364 = vmatprep.subr.mxu0 0.0
    %365 = vmatpush1.msra.mxu0 0.0
    %366 = vmatprep.subr.mxu0 0.0
    %367 = vmatpush1.msra.mxu0 0.0
    %368 = vmatprep.subr.mxu0 0.0
    %369 = vmatpush1.msra.mxu0 0.0
    %370 = vmatprep.subr.mxu0 0.0
    %371 = vmatpush1.msra.mxu0 0.0
    %372 = vmatprep.subr.mxu0 0.0
    %373 = vmatpush1.msra.mxu0 0.0
    %374 = vmatprep.subr.mxu0 0.0
    %375 = vmatpush1.msra.mxu0 0.0
    %376 = vmatprep.subr.mxu0 0.0
    %377 = vmatpush1.msra.mxu0 0.0
    %378 = vmatprep.subr.mxu0 0.0
    %379 = vmatpush1.msra.mxu0 0.0
    %380 = vmatprep.subr.mxu0 0.0
    %381 = vmatpush1.msra.mxu0 0.0
    %382 = vmatprep.subr.mxu0 0.0
    %383 = vmatpush1.msra.mxu0 0.0
    %384 = vmatprep.subr.mxu0 0.0
    %385 = vmatpush1.msra.mxu0 0.0
    %386 = vmatprep.mubr.f32.mxu0 0.0
    %v387 = vand.u32 %v123, 4294901760
    %v388 = vsub.f32 %v123, %v387
    %389 = vmatmul.mubr.f32.gmra.mrb[0].mxu0 %v388
    %v390 = vpop.f32.mrb[0].mxu0
    %v391 = vadd.f32 %v305, %v390
    %v392 = vpop.f32.mrb[0].mxu0
    %393 = vmatprep.mubr.f32.mxu0 0.0
    %v394 = vand.u32 %v126, 4294901760
    %v395 = vsub.f32 %v126, %v394
    %396 = vmatmul.mubr.f32.gmra.mrb[0].mxu0 %v395
    %v397 = vpop.f32.mrb[0].mxu0
    %v398 = vadd.f32 %v311, %v397
    %v399 = vpop.f32.mrb[0].mxu0
    %400 = vdwg.mxu0
    %401 = vmatprep.subr.mxu0 0.0
    %v402 = vand.u32 %v111, 4294901760
    %403 = vmatpush1.msra.mxu0 %v402
    %404 = vmatprep.subr.mxu0 0.0
    %v405 = vand.u32 %v112, 4294901760
    %406 = vmatpush1.msra.mxu0 %v405
    %407 = vmatprep.subr.mxu0 0.0
    %v408 = vand.u32 %v113, 4294901760
    %409 = vmatpush1.msra.mxu0 %v408
    %410 = vmatprep.subr.mxu0 0.0
    %v411 = vand.u32 %v114, 4294901760
    %412 = vmatpush1.msra.mxu0 %v411
    %413 = vmatprep.subr.mxu0 0.0
    %414 = vmatpush1.msra.mxu0 0.0
    %415 = vmatprep.subr.mxu0 0.0
    %416 = vmatpush1.msra.mxu0 0.0
    %417 = vmatprep.subr.mxu0 0.0
    %418 = vmatpush1.msra.mxu0 0.0
    %419 = vmatprep.subr.mxu0 0.0
    %420 = vmatpush1.msra.mxu0 0.0
    %421 = vmatprep.subr.mxu0 0.0
    %422 = vmatpush1.msra.mxu0 0.0
    %423 = vmatprep.subr.mxu0 0.0
    %424 = vmatpush1.msra.mxu0 0.0
    %425 = vmatprep.subr.mxu0 0.0
    %426 = vmatpush1.msra.mxu0 0.0
    %427 = vmatprep.subr.mxu0 0.0
    %428 = vmatpush1.msra.mxu0 0.0
    %429 = vmatprep.subr.mxu0 0.0
    %430 = vmatpush1.msra.mxu0 0.0
    %431 = vmatprep.subr.mxu0 0.0
    %432 = vmatpush1.msra.mxu0 0.0
    %433 = vmatprep.subr.mxu0 0.0
    %434 = vmatpush1.msra.mxu0 0.0
    %435 = vmatprep.subr.mxu0 0.0
    %436 = vmatpush1.msra.mxu0 0.0
    %437 = vmatprep.subr.mxu0 0.0
    %438 = vmatpush1.msra.mxu0 0.0
    %439 = vmatprep.subr.mxu0 0.0
    %440 = vmatpush1.msra.mxu0 0.0
    %441 = vmatprep.subr.mxu0 0.0
    %442 = vmatpush1.msra.mxu0 0.0
    %443 = vmatprep.subr.mxu0 0.0
    %444 = vmatpush1.msra.mxu0 0.0
    %445 = vmatprep.subr.mxu0 0.0
    %446 = vmatpush1.msra.mxu0 0.0
    %447 = vmatprep.subr.mxu0 0.0
    %448 = vmatpush1.msra.mxu0 0.0
    %449 = vmatprep.subr.mxu0 0.0
    %450 = vmatpush1.msra.mxu0 0.0
    %451 = vmatprep.subr.mxu0 0.0
    %452 = vmatpush1.msra.mxu0 0.0
    %453 = vmatprep.subr.mxu0 0.0
    %454 = vmatpush1.msra.mxu0 0.0
    %455 = vmatprep.subr.mxu0 0.0
    %456 = vmatpush1.msra.mxu0 0.0
    %457 = vmatprep.subr.mxu0 0.0
    %458 = vmatpush1.msra.mxu0 0.0
    %459 = vmatprep.subr.mxu0 0.0
    %460 = vmatpush1.msra.mxu0 0.0
    %461 = vmatprep.subr.mxu0 0.0
    %462 = vmatpush1.msra.mxu0 0.0
    %463 = vmatprep.subr.mxu0 0.0
    %464 = vmatpush1.msra.mxu0 0.0
    %465 = vmatprep.subr.mxu0 0.0
    %466 = vmatpush1.msra.mxu0 0.0
    %467 = vmatprep.subr.mxu0 0.0
    %468 = vmatpush1.msra.mxu0 0.0
    %469 = vmatprep.mubr.f32.mxu0 0.0
    %v470 = vand.u32 %v123, 4294901760
    %v471 = vsub.f32 %v123, %v470
    %v472 = vand.u32 %v471, 4294901760
    %473 = vmatmul.mubr.f32.gmra.mrb[0].mxu0 %v472
    %v474 = vpop.f32.mrb[0].mxu0
    %v475 = vadd.f32 %v391, %v474
    %v476 = vpop.f32.mrb[0].mxu0
    %477 = vmatprep.mubr.f32.mxu0 0.0
    %v478 = vand.u32 %v126, 4294901760
    %v479 = vsub.f32 %v126, %v478
    %v480 = vand.u32 %v479, 4294901760
    %481 = vmatmul.mubr.f32.gmra.mrb[0].mxu0 %v480
    %v482 = vpop.f32.mrb[0].mxu0
    %v483 = vadd.f32 %v398, %v482
    %v484 = vpop.f32.mrb[0].mxu0
    %485 = vdwg.mxu0
    %486 = vmatprep.subr.mxu0 0.0
    %v487 = vand.u32 %v111, 4294901760
    %v488 = vsub.f32 %v111, %v487
    %v489 = vand.u32 %v488, 4294901760
    %490 = vmatpush1.msra.mxu0 %v489
    %491 = vmatprep.subr.mxu0 0.0
    %v492 = vand.u32 %v112, 4294901760
    %v493 = vsub.f32 %v112, %v492
    %v494 = vand.u32 %v493, 4294901760
    %495 = vmatpush1.msra.mxu0 %v494
    %496 = vmatprep.subr.mxu0 0.0
    %v497 = vand.u32 %v113, 4294901760
    %v498 = vsub.f32 %v113, %v497
    %v499 = vand.u32 %v498, 4294901760
    %500 = vmatpush1.msra.mxu0 %v499
    %501 = vmatprep.subr.mxu0 0.0
    %v502 = vand.u32 %v114, 4294901760
    %v503 = vsub.f32 %v114, %v502
    %v504 = vand.u32 %v503, 4294901760
    %505 = vmatpush1.msra.mxu0 %v504
    %506 = vmatprep.subr.mxu0 0.0
    %507 = vmatpush1.msra.mxu0 0.0
    %508 = vmatprep.subr.mxu0 0.0
    %509 = vmatpush1.msra.mxu0 0.0
    %510 = vmatprep.subr.mxu0 0.0
    %511 = vmatpush1.msra.mxu0 0.0
    %512 = vmatprep.subr.mxu0 0.0
    %513 = vmatpush1.msra.mxu0 0.0
    %514 = vmatprep.subr.mxu0 0.0
    %515 = vmatpush1.msra.mxu0 0.0
    %516 = vmatprep.subr.mxu0 0.0
    %517 = vmatpush1.msra.mxu0 0.0
    %518 = vmatprep.subr.mxu0 0.0
    %519 = vmatpush1.msra.mxu0 0.0
    %520 = vmatprep.subr.mxu0 0.0
    %521 = vmatpush1.msra.mxu0 0.0
    %522 = vmatprep.subr.mxu0 0.0
    %523 = vmatpush1.msra.mxu0 0.0
    %524 = vmatprep.subr.mxu0 0.0
    %525 = vmatpush1.msra.mxu0 0.0
    %526 = vmatprep.subr.mxu0 0.0
    %527 = vmatpush1.msra.mxu0 0.0
    %528 = vmatprep.subr.mxu0 0.0
    %529 = vmatpush1.msra.mxu0 0.0
    %530 = vmatprep.subr.mxu0 0.0
    %531 = vmatpush1.msra.mxu0 0.0
    %532 = vmatprep.subr.mxu0 0.0
    %533 = vmatpush1.msra.mxu0 0.0
    %534 = vmatprep.subr.mxu0 0.0
    %535 = vmatpush1.msra.mxu0 0.0
    %536 = vmatprep.subr.mxu0 0.0
    %537 = vmatpush1.msra.mxu0 0.0
    %538 = vmatprep.subr.mxu0 0.0
    %539 = vmatpush1.msra.mxu0 0.0
    %540 = vmatprep.subr.mxu0 0.0
    %541 = vmatpush1.msra.mxu0 0.0
    %542 = vmatprep.subr.mxu0 0.0
    %543 = vmatpush1.msra.mxu0 0.0
    %544 = vmatprep.subr.mxu0 0.0
    %545 = vmatpush1.msra.mxu0 0.0
    %546 = vmatprep.subr.mxu0 0.0
    %547 = vmatpush1.msra.mxu0 0.0
    %548 = vmatprep.subr.mxu0 0.0
    %549 = vmatpush1.msra.mxu0 0.0
    %550 = vmatprep.subr.mxu0 0.0
    %551 = vmatpush1.msra.mxu0 0.0
    %552 = vmatprep.subr.mxu0 0.0
    %553 = vmatpush1.msra.mxu0 0.0
    %554 = vmatprep.subr.mxu0 0.0
    %555 = vmatpush1.msra.mxu0 0.0
    %556 = vmatprep.subr.mxu0 0.0
    %557 = vmatpush1.msra.mxu0 0.0
    %558 = vmatprep.subr.mxu0 0.0
    %559 = vmatpush1.msra.mxu0 0.0
    %560 = vmatprep.subr.mxu0 0.0
    %561 = vmatpush1.msra.mxu0 0.0
    %562 = vmatprep.mubr.f32.mxu0 0.0
    %v563 = vand.u32 %v123, 4294901760
    %564 = vmatmul.mubr.f32.gmra.mrb[0].mxu0 %v563
    %v565 = vpop.f32.mrb[0].mxu0
    %v566 = vadd.f32 %v475, %v565
    %v567 = vpop.f32.mrb[0].mxu0
    %568 = vmatprep.mubr.f32.mxu0 0.0
    %v569 = vand.u32 %v126, 4294901760
    %570 = vmatmul.mubr.f32.gmra.mrb[0].mxu0 %v569
    %v571 = vpop.f32.mrb[0].mxu0
    %v572 = vadd.f32 %v483, %v571
    %v573 = vpop.f32.mrb[0].mxu0
    %574 = vdwg.mxu0
    %575 = vmatprep.subr.mxu0 0.0
    %v576 = vand.u32 %v111, 4294901760
    %577 = vmatpush1.msra.mxu0 %v576
    %578 = vmatprep.subr.mxu0 0.0
    %v579 = vand.u32 %v112, 4294901760
    %580 = vmatpush1.msra.mxu0 %v579
    %581 = vmatprep.subr.mxu0 0.0
    %v582 = vand.u32 %v113, 4294901760
    %583 = vmatpush1.msra.mxu0 %v582
    %584 = vmatprep.subr.mxu0 0.0
    %v585 = vand.u32 %v114, 4294901760
    %586 = vmatpush1.msra.mxu0 %v585
    %587 = vmatprep.subr.mxu0 0.0
    %588 = vmatpush1.msra.mxu0 0.0
    %589 = vmatprep.subr.mxu0 0.0
    %590 = vmatpush1.msra.mxu0 0.0
    %591 = vmatprep.subr.mxu0 0.0
    %592 = vmatpush1.msra.mxu0 0.0
    %593 = vmatprep.subr.mxu0 0.0
    %594 = vmatpush1.msra.mxu0 0.0
    %595 = vmatprep.subr.mxu0 0.0
    %596 = vmatpush1.msra.mxu0 0.0
    %597 = vmatprep.subr.mxu0 0.0
    %598 = vmatpush1.msra.mxu0 0.0
    %599 = vmatprep.subr.mxu0 0.0
    %600 = vmatpush1.msra.mxu0 0.0
    %601 = vmatprep.subr.mxu0 0.0
    %602 = vmatpush1.msra.mxu0 0.0
    %603 = vmatprep.subr.mxu0 0.0
    %604 = vmatpush1.msra.mxu0 0.0
    %605 = vmatprep.subr.mxu0 0.0
    %606 = vmatpush1.msra.mxu0 0.0
    %607 = vmatprep.subr.mxu0 0.0
    %608 = vmatpush1.msra.mxu0 0.0
    %609 = vmatprep.subr.mxu0 0.0
    %610 = vmatpush1.msra.mxu0 0.0
    %611 = vmatprep.subr.mxu0 0.0
    %612 = vmatpush1.msra.mxu0 0.0
    %613 = vmatprep.subr.mxu0 0.0
    %614 = vmatpush1.msra.mxu0 0.0
    %615 = vmatprep.subr.mxu0 0.0
    %616 = vmatpush1.msra.mxu0 0.0
    %617 = vmatprep.subr.mxu0 0.0
    %618 = vmatpush1.msra.mxu0 0.0
    %619 = vmatprep.subr.mxu0 0.0
    %620 = vmatpush1.msra.mxu0 0.0
    %621 = vmatprep.subr.mxu0 0.0
    %622 = vmatpush1.msra.mxu0 0.0
    %623 = vmatprep.subr.mxu0 0.0
    %624 = vmatpush1.msra.mxu0 0.0
    %625 = vmatprep.subr.mxu0 0.0
    %626 = vmatpush1.msra.mxu0 0.0
    %627 = vmatprep.subr.mxu0 0.0
    %628 = vmatpush1.msra.mxu0 0.0
    %629 = vmatprep.subr.mxu0 0.0
    %630 = vmatpush1.msra.mxu0 0.0
    %631 = vmatprep.subr.mxu0 0.0
    %632 = vmatpush1.msra.mxu0 0.0
    %633 = vmatprep.subr.mxu0 0.0
    %634 = vmatpush1.msra.mxu0 0.0
    %635 = vmatprep.subr.mxu0 0.0
    %636 = vmatpush1.msra.mxu0 0.0
    %637 = vmatprep.subr.mxu0 0.0
    %638 = vmatpush1.msra.mxu0 0.0
    %639 = vmatprep.subr.mxu0 0.0
    %640 = vmatpush1.msra.mxu0 0.0
    %641 = vmatprep.subr.mxu0 0.0
    %642 = vmatpush1.msra.mxu0 0.0
    %643 = vmatprep.mubr.f32.mxu0 0.0
    %v644 = vand.u32 %v123, 4294901760
    %645 = vmatmul.mubr.f32.gmra.mrb[0].mxu0 %v644
    %v646 = vpop.f32.mrb[0].mxu0
    %v647 = vadd.f32 %v566, %v646
    %v648 = vpop.f32.mrb[0].mxu0
    %649 = vmatprep.mubr.f32.mxu0 0.0
    %v650 = vand.u32 %v126, 4294901760
    %651 = vmatmul.mubr.f32.gmra.mrb[0].mxu0 %v650
    %v652 = vpop.f32.mrb[0].mxu0
    %v653 = vadd.f32 %v572, %v652
    %v654 = vpop.f32.mrb[0].mxu0
    %655 = vdwg.mxu0
    %vm656 = vcmask 785408
    %657 = vst.msk [vmem:[#allocation7] sm:$0xff] %vm656, %v647
    %658 = vst.msk [vmem:[#allocation7 + $0x8] sm:$0xff] %vm656, %v653
    // Predicated region
    $region30: #{tpu_custom_call.1} parent=1 // pred_check
      _
    $region31: #{tpu_custom_call.1} parent=1 // pred_check_branch
      %660 = sbr.rel (0) target = $region33
    $region32: #{tpu_custom_call.1} parent=1 // pred_region
      %s662 = ssub.s32 256, 256
      %663 = vsyncadd [#allocation4], %s662
      %s664 = sshll.u32 [#allocation7], 4
      %s665 = int_to_ptr.vmem [resolvable:$true] %s664
      %670 = dma.vmem_to_hbm [thread:$0]  %s665, 256, %s5, [#allocation4], 128, 128, 8
    $region33: #{tpu_custom_call.1} parent=1 // pred_fallthru
      _
    // Predicated region
    $region34: #{tpu_custom_call.1} parent=1 // pred_check
      _
    $region35: #{tpu_custom_call.1} parent=1 // pred_check_branch
      %672 = sbr.rel (0) target = $region37
    $region36: #{tpu_custom_call.1} parent=1 // pred_region
      %673 = dma.done [#allocation4], 256
    $region37: #{tpu_custom_call.1} parent=1 // pred_fallthru
      _
    %674 = vsyncpa [#allocation3], 1
    %675 = vsyncpa [#allocation6], 1
    %676 = vsyncpa [#allocation4], 1

</llo_original>
